<compile_context>
chip_gen: v5e
topology: v5e:2x2
jax: 0.10.0
libtpu: 0.0.40
codegen_flags: <defaults>
</compile_context>

<pallas_src>
import functools

import jax
import jax.numpy as jnp
from jax.experimental import pallas as pl
from jax.experimental.pallas import tpu as pltpu

_LANE = 128            # lane width: all column dims padded to a multiple of this
_SUBLANE = 16          # bf16 sublane pack: batch rows padded to a multiple of this
_MAX_BATCH_TILE = 512  # per-grid-step batch tile (VMEM-safe on v7x 64 MiB)


def multicnn_kernel(x_ref, rep_ref, vcol_ref, convm_ref, convb_ref,
                    w1_ref, b1_ref, w2_ref, b2_ref, out_ref):
    # x_ref     : (Bt, L)        int32 raw token ids (batch tile)
    # rep_ref   : (L, L*V)       f32   lane-repeat matrix rep[l, l*V+v] = 1
    # vcol_ref  : (1, L*V)       f32   vcol[0, l*V+v] = v
    # convm_ref : (L*V, FTp)     bf16  embedding folded into Toeplitz conv matrix
    # convb_ref : (1, FTp)       f32   conv bias broadcast over t (f-major), padded
    # w1_ref    : (FTp, Hp)      bf16  dense1 weight (w1.T), zero-padded
    # b1_ref    : (1, Hp)        f32
    # w2_ref    : (Hp, Cp)       bf16  dense2 weight (w2.T), zero-padded
    # b2_ref    : (1, Cp)        f32
    # out_ref   : (Bt, Cp)       f32

    # In-kernel one-hot of the token ids (replaces the XLA embedding gather):
    #   x_rep[b, l*V+v] = x[b, l]   via a tiny MXU matmul against rep
    #   onehot[b, l*V+v] = 1.0 iff x[b, l] == v
    xf = x_ref[...].astype(jnp.float32)                              # exact ints
    x_rep = jnp.dot(xf, rep_ref[...], preferred_element_type=jnp.float32)
    onehot = jnp.where(jnp.abs(x_rep - vcol_ref[...]) < 0.5,
                       jnp.float32(1.0), jnp.float32(0.0)).astype(jnp.bfloat16)

    # Embedding + Conv1d (valid) + flatten (PyTorch f-major order) fused into
    # ONE batched matmul against the folded (L*V, FTp) matrix; f32 accumulation.
    conv = jnp.dot(onehot, convm_ref[...],
                   preferred_element_type=jnp.float32)               # (Bt, FTp)
    a = jnp.maximum(conv + convb_ref[...], 0.0)                      # f32 ReLU

    # dense1 (+ ReLU): lane-dense (Bt, Hp).
    h = jnp.dot(a.astype(jnp.bfloat16), w1_ref[...],
                preferred_element_type=jnp.float32) + b1_ref[...]
    h = jnp.maximum(h, 0.0)

    # dense2: single unmasked lane-dense store of the (Bt, Cp) tile.
    out_ref[...] = jnp.dot(h.astype(jnp.bfloat16), w2_ref[...],
                           preferred_element_type=jnp.float32) + b2_ref[...]


def prepare_params(params, compute_dtype=jnp.bfloat16):
    """One-time parameter re-layout / padding.  Call ONCE, outside the forward."""
    emb_table, conv_w, conv_b, w1, b1, w2, b2 = params
    V, E = emb_table.shape
    F, _, K = conv_w.shape
    H, FT = w1.shape
    T = FT // F                       # input_length - kernel_size + 1
    L = T + K - 1                     # input_length
    C = w2.shape[0]

    ft_pad = _LANE * pl.cdiv(FT, _LANE)   # 224 -> 256
    h_pad = _LANE * pl.cdiv(H, _LANE)     # 32  -> 128
    c_pad = _LANE * pl.cdiv(C, _LANE)     # 4   -> 128

    # Toeplitz conv matrix (f32): conv_mat[l, e, f*T+t] = conv_w[f, e, l-t] if
    # 0 <= l-t < K else 0.  (emb_flat @ conv_mat) reproduces the PyTorch conv1d
    # output already flattened f-major / t-minor.
    l = jnp.arange(L)[:, None]
    t = jnp.arange(T)[None, :]
    k = l - t
    valid = (k >= 0) & (k < K)
    w_kef = jnp.transpose(conv_w, (2, 1, 0))                 # (K, E, F)
    taps = w_kef[jnp.clip(k, 0, K - 1)]                      # (L, T, E, F)
    taps = jnp.where(valid[:, :, None, None], taps, 0.0)
    conv_mat = jnp.transpose(taps, (0, 2, 3, 1)).reshape(L, E, F * T)

    # Fold the embedding table in (all in f32, cast to bf16 once at the end):
    #   emb_conv[l*V + v, ft] = sum_e emb[v, e] * conv_mat[l, e, ft]
    emb_conv = jnp.einsum('ve,lef->lvf', emb_table, conv_mat).reshape(L * V, F * T)
    emb_conv_p = jnp.zeros((L * V, ft_pad), jnp.float32).at[:, :FT].set(emb_conv)

    conv_b_p = jnp.zeros((1, ft_pad), jnp.float32).at[0, :FT].set(
        jnp.repeat(conv_b, T))                               # f-major, t-minor

    # Helpers for the in-kernel one-hot (exact small integers in f32).
    rep = (jnp.arange(L)[:, None] == (jnp.arange(L * V)[None, :] // V)
           ).astype(jnp.float32)                             # (L, L*V)
    vcol = (jnp.arange(L * V)[None, :] % V).astype(jnp.float32)   # (1, L*V)

    w1_p = jnp.zeros((ft_pad, h_pad), jnp.float32).at[:FT, :H].set(w1.T)
    b1_p = jnp.zeros((1, h_pad), jnp.float32).at[0, :H].set(b1)
    w2_p = jnp.zeros((h_pad, c_pad), jnp.float32).at[:H, :C].set(w2.T)
    b2_p = jnp.zeros((1, c_pad), jnp.float32).at[0, :C].set(b2)

    return (
        rep,                                    # (L, L*V)     f32
        vcol,                                   # (1, L*V)     f32
        emb_conv_p.astype(compute_dtype),       # (L*V, FTp)   bf16
        conv_b_p,                               # (1, FTp)     f32
        w1_p.astype(compute_dtype),             # (FTp, Hp)    bf16
        b1_p,                                   # (1, Hp)      f32
        w2_p.astype(compute_dtype),             # (Hp, Cp)     bf16
        b2_p,                                   # (1, Cp)      f32
    )


@functools.partial(jax.jit, static_argnames=("num_classes",))
def multicnn_forward(x_idx, prep, *, num_classes):
    rep, vcol, convm, convb, w1, b1, w2, b2 = prep
    B, L = x_idx.shape
    LV = rep.shape[1]
    ft_pad = convm.shape[1]
    h_pad = w1.shape[1]
    c_pad = w2.shape[1]

    # Sublane-dense batch tile, capped so per-step VMEM stays small on v7x.
    b_tile = min(_MAX_BATCH_TILE, _SUBLANE * pl.cdiv(B, _SUBLANE))
    b_pad = b_tile * pl.cdiv(B, b_tile)
    x_pad = jnp.pad(x_idx.astype(jnp.int32), ((0, b_pad - B), (0, 0)))

    flops = 2 * b_pad * (L * LV + LV * ft_pad + ft_pad * h_pad + h_pad * c_pad)
    bytes_accessed = (x_pad.size * 4 + b_pad * c_pad * 4
                      + sum(int(a.size) * a.dtype.itemsize
                            for a in (rep, vcol, convm, convb, w1, b1, w2, b2)))

    def w_spec(shape):  # weights: constant block index -> stay VMEM-resident
        return pl.BlockSpec(shape, lambda i: (0, 0))

    out_padded = pl.pallas_call(
        multicnn_kernel,
        out_shape=jax.ShapeDtypeStruct((b_pad, c_pad), jnp.float32),
        grid=(b_pad // b_tile,),
        in_specs=[
            pl.BlockSpec((b_tile, L), lambda i: (i, 0)),
            w_spec(rep.shape), w_spec(vcol.shape),
            w_spec(convm.shape), w_spec(convb.shape),
            w_spec(w1.shape), w_spec(b1.shape),
            w_spec(w2.shape), w_spec(b2.shape),
        ],
        out_specs=pl.BlockSpec((b_tile, c_pad), lambda i: (i, 0)),
        compiler_params=pltpu.CompilerParams(
            dimension_semantics=("parallel",)),   # shards across v7x TCs as B grows
        cost_estimate=pl.CostEstimate(flops=flops, transcendentals=0,
                                      bytes_accessed=bytes_accessed),
    )(x_pad, rep, vcol, convm, convb, w1, b1, w2, b2)

    return out_padded[:B, :num_classes]


if __name__ == "__main__":
    # Small hyper-parameters consistent with MultiCNN.__init__.
    B, L = 2, 16          # batch, input_length
    V, E = 32, 8          # vocab_size, embedding_dim
    F, K = 16, 3          # num_filters, kernel_size
    H, C = 32, 4          # hidden_size, num_classes
    T = L - K + 1

    key = jax.random.PRNGKey(0)
    keys = jax.random.split(key, 8)
    emb_table = jax.random.normal(keys[0], (V, E), jnp.float32) * 0.1
    conv_w = jax.random.normal(keys[1], (F, E, K), jnp.float32) * 0.1
    conv_b = jax.random.normal(keys[2], (F,), jnp.float32) * 0.1
    w1 = jax.random.normal(keys[3], (H, F * T), jnp.float32) * 0.05
    b1 = jax.random.normal(keys[4], (H,), jnp.float32) * 0.1
    w2 = jax.random.normal(keys[5], (C, H), jnp.float32) * 0.1
    b2 = jax.random.normal(keys[6], (C,), jnp.float32) * 0.1
    x = jax.random.randint(keys[7], (B, L), 0, V, dtype=jnp.int32)

    params = (emb_table, conv_w, conv_b, w1, b1, w2, b2)
    prep = prepare_params(params)     # one-time relayout, outside forward path
    out = jax.block_until_ready(multicnn_forward(x, prep, num_classes=C))

    # Pure-JAX f32 reference replicating the PyTorch forward exactly (NCW conv,
    # f-major flatten), used as a correctness check.
    emb = jnp.take(emb_table, x, axis=0)                       # (B, L, E)
    conv = sum(jnp.einsum('bte,fe->bft', emb[:, k:k + T, :], conv_w[:, :, k])
               for k in range(K)) + conv_b[None, :, None]
    conv = jnp.maximum(conv, 0.0)                              # (B, F, T)
    flat = conv.reshape(B, F * T)                              # f*T + t order
    h_ref = jnp.maximum(flat @ w1.T + b1, 0.0)
    ref = h_ref @ w2.T + b2

    assert out.shape == (B, C)
    # bf16 matmul inputs + f32 accumulation: tolerance loosened vs pure-f32.
    assert jnp.max(jnp.abs(out - ref)) < 2e-2, "mismatch vs reference"
    print("KERNEL_OK")
</pallas_src>

<mosaic_0001>
module attributes {stable_mosaic.version = 11 : i64} {
  func.func @multicnn_kernel(%arg0: i32, %arg1: memref<16x16xi32, #tpu.memory_space<vmem>>, %arg2: memref<16x512xf32, #tpu.memory_space<vmem>>, %arg3: memref<1x512xf32, #tpu.memory_space<vmem>>, %arg4: memref<512x256xbf16, #tpu.memory_space<vmem>>, %arg5: memref<1x256xf32, #tpu.memory_space<vmem>>, %arg6: memref<256x128xbf16, #tpu.memory_space<vmem>>, %arg7: memref<1x128xf32, #tpu.memory_space<vmem>>, %arg8: memref<128x128xbf16, #tpu.memory_space<vmem>>, %arg9: memref<1x128xf32, #tpu.memory_space<vmem>>, %arg10: memref<16x128xf32, #tpu.memory_space<vmem>>) attributes {dimension_semantics = [#tpu.dimension_semantics<parallel>], iteration_bounds = array<i64: 1>, scalar_prefetch = 0 : i64, scratch_operands = 0 : i64, tpu.core_type = #tpu.core_type<tc>, window_params = [{transform_indices = @transform_0, window_bounds = array<i64: 16, 16>}, {pipeline_mode = #tpu.pipeline_mode<synchronous>, transform_indices = @transform_1, window_bounds = array<i64: 16, 512>}, {pipeline_mode = #tpu.pipeline_mode<synchronous>, transform_indices = @transform_2, window_bounds = array<i64: 1, 512>}, {pipeline_mode = #tpu.pipeline_mode<synchronous>, transform_indices = @transform_3, window_bounds = array<i64: 512, 256>}, {pipeline_mode = #tpu.pipeline_mode<synchronous>, transform_indices = @transform_4, window_bounds = array<i64: 1, 256>}, {pipeline_mode = #tpu.pipeline_mode<synchronous>, transform_indices = @transform_5, window_bounds = array<i64: 256, 128>}, {pipeline_mode = #tpu.pipeline_mode<synchronous>, transform_indices = @transform_6, window_bounds = array<i64: 1, 128>}, {pipeline_mode = #tpu.pipeline_mode<synchronous>, transform_indices = @transform_7, window_bounds = array<i64: 128, 128>}, {pipeline_mode = #tpu.pipeline_mode<synchronous>, transform_indices = @transform_8, window_bounds = array<i64: 1, 128>}, {transform_indices = @transform_9, window_bounds = array<i64: 16, 128>}]} {
    %c0 = arith.constant 0 : index
    %c0_0 = arith.constant 0 : index
    %0 = vector.load %arg1[%c0, %c0_0] : memref<16x16xi32, #tpu.memory_space<vmem>>, vector<16x16xi32>
    %1 = arith.sitofp %0 : vector<16x16xi32> to vector<16x16xf32>
    %c0_1 = arith.constant 0 : index
    %c0_2 = arith.constant 0 : index
    %2 = vector.load %arg2[%c0_1, %c0_2] : memref<16x512xf32, #tpu.memory_space<vmem>>, vector<16x512xf32>
    %cst = arith.constant dense<0.000000e+00> : vector<16x512xf32>
    %3 = tpu.matmul %1, %2, %cst {dimension_numbers = #tpu.dot_dimension_numbers<[1], [0], [0], [1], [0, 0, 1, 1], [], []>} : vector<16x16xf32>, vector<16x512xf32>, vector<16x512xf32> -> vector<16x512xf32>
    %c0_3 = arith.constant 0 : index
    %c0_4 = arith.constant 0 : index
    %4 = vector.load %arg3[%c0_3, %c0_4] : memref<1x512xf32, #tpu.memory_space<vmem>>, vector<1x512xf32>
    %5 = vector.broadcast %4 : vector<1x512xf32> to vector<16x512xf32>
    %6 = arith.subf %3, %5 : vector<16x512xf32>
    %7 = math.absf %6 : vector<16x512xf32>
    %cst_5 = arith.constant 5.000000e-01 : f32
    %8 = vector.broadcast %cst_5 : f32 to vector<16x512xf32>
    %9 = arith.cmpf olt, %7, %8 : vector<16x512xf32>
    %cst_6 = arith.constant 1.000000e+00 : f32
    %cst_7 = arith.constant 0.000000e+00 : f32
    %10 = vector.broadcast %cst_6 : f32 to vector<16x512xf32>
    %11 = vector.broadcast %cst_7 : f32 to vector<16x512xf32>
    %12 = arith.select %9, %10, %11 : vector<16x512xi1>, vector<16x512xf32>
    %13 = arith.truncf %12 : vector<16x512xf32> to vector<16x512xbf16>
    %c0_8 = arith.constant 0 : index
    %c0_9 = arith.constant 0 : index
    %14 = vector.load %arg4[%c0_8, %c0_9] : memref<512x256xbf16, #tpu.memory_space<vmem>>, vector<512x256xbf16>
    %cst_10 = arith.constant dense<0.000000e+00> : vector<16x256xf32>
    %15 = tpu.matmul %13, %14, %cst_10 {dimension_numbers = #tpu.dot_dimension_numbers<[1], [0], [0], [1], [0, 0, 1, 1], [], []>} : vector<16x512xbf16>, vector<512x256xbf16>, vector<16x256xf32> -> vector<16x256xf32>
    %c0_11 = arith.constant 0 : index
    %c0_12 = arith.constant 0 : index
    %16 = vector.load %arg5[%c0_11, %c0_12] : memref<1x256xf32, #tpu.memory_space<vmem>>, vector<1x256xf32>
    %17 = vector.broadcast %16 : vector<1x256xf32> to vector<16x256xf32>
    %18 = arith.addf %15, %17 : vector<16x256xf32>
    %cst_13 = arith.constant 0.000000e+00 : f32
    %19 = vector.broadcast %cst_13 : f32 to vector<16x256xf32>
    %20 = arith.maximumf %18, %19 : vector<16x256xf32>
    %21 = arith.truncf %20 : vector<16x256xf32> to vector<16x256xbf16>
    %c0_14 = arith.constant 0 : index
    %c0_15 = arith.constant 0 : index
    %22 = vector.load %arg6[%c0_14, %c0_15] : memref<256x128xbf16, #tpu.memory_space<vmem>>, vector<256x128xbf16>
    %cst_16 = arith.constant dense<0.000000e+00> : vector<16x128xf32>
    %23 = tpu.matmul %21, %22, %cst_16 {dimension_numbers = #tpu.dot_dimension_numbers<[1], [0], [0], [1], [0, 0, 1, 1], [], []>} : vector<16x256xbf16>, vector<256x128xbf16>, vector<16x128xf32> -> vector<16x128xf32>
    %c0_17 = arith.constant 0 : index
    %c0_18 = arith.constant 0 : index
    %24 = vector.load %arg7[%c0_17, %c0_18] : memref<1x128xf32, #tpu.memory_space<vmem>>, vector<1x128xf32>
    %25 = vector.broadcast %24 : vector<1x128xf32> to vector<16x128xf32>
    %26 = arith.addf %23, %25 : vector<16x128xf32>
    %cst_19 = arith.constant 0.000000e+00 : f32
    %27 = vector.broadcast %cst_19 : f32 to vector<16x128xf32>
    %28 = arith.maximumf %26, %27 : vector<16x128xf32>
    %29 = arith.truncf %28 : vector<16x128xf32> to vector<16x128xbf16>
    %c0_20 = arith.constant 0 : index
    %c0_21 = arith.constant 0 : index
    %30 = vector.load %arg8[%c0_20, %c0_21] : memref<128x128xbf16, #tpu.memory_space<vmem>>, vector<128x128xbf16>
    %cst_22 = arith.constant dense<0.000000e+00> : vector<16x128xf32>
    %31 = tpu.matmul %29, %30, %cst_22 {dimension_numbers = #tpu.dot_dimension_numbers<[1], [0], [0], [1], [0, 0, 1, 1], [], []>} : vector<16x128xbf16>, vector<128x128xbf16>, vector<16x128xf32> -> vector<16x128xf32>
    %c0_23 = arith.constant 0 : index
    %c0_24 = arith.constant 0 : index
    %32 = vector.load %arg9[%c0_23, %c0_24] : memref<1x128xf32, #tpu.memory_space<vmem>>, vector<1x128xf32>
    %33 = vector.broadcast %32 : vector<1x128xf32> to vector<16x128xf32>
    %34 = arith.addf %31, %33 : vector<16x128xf32>
    %c0_25 = arith.constant 0 : index
    %c0_26 = arith.constant 0 : index
    %35 = vector.load %arg10[%c0_25, %c0_26] : memref<16x128xf32, #tpu.memory_space<vmem>>, vector<16x128xf32>
    tpu.vector_store %arg10[%c0_25, %c0_26], %34 {strides = array<i32>} : memref<16x128xf32, #tpu.memory_space<vmem>>, vector<16x128xf32>,
    return
  }
  func.func @transform_0(%arg0: i32) -> (i32, i32) {
    %c0_i32 = arith.constant 0 : i32
    %c0_i32_0 = arith.constant 0 : i32
    return %arg0, %c0_i32 : i32, i32
  }
  func.func @transform_1(%arg0: i32) -> (i32, i32) {
    %c0_i32 = arith.constant 0 : i32
    %c0_i32_0 = arith.constant 0 : i32
    %c0_i32_1 = arith.constant 0 : i32
    return %c0_i32, %c0_i32_0 : i32, i32
  }
  func.func @transform_2(%arg0: i32) -> (i32, i32) {
    %c0_i32 = arith.constant 0 : i32
    %c0_i32_0 = arith.constant 0 : i32
    %c0_i32_1 = arith.constant 0 : i32
    return %c0_i32, %c0_i32_0 : i32, i32
  }
  func.func @transform_3(%arg0: i32) -> (i32, i32) {
    %c0_i32 = arith.constant 0 : i32
    %c0_i32_0 = arith.constant 0 : i32
    %c0_i32_1 = arith.constant 0 : i32
    return %c0_i32, %c0_i32_0 : i32, i32
  }
  func.func @transform_4(%arg0: i32) -> (i32, i32) {
    %c0_i32 = arith.constant 0 : i32
    %c0_i32_0 = arith.constant 0 : i32
    %c0_i32_1 = arith.constant 0 : i32
    return %c0_i32, %c0_i32_0 : i32, i32
  }
  func.func @transform_5(%arg0: i32) -> (i32, i32) {
    %c0_i32 = arith.constant 0 : i32
    %c0_i32_0 = arith.constant 0 : i32
    %c0_i32_1 = arith.constant 0 : i32
    return %c0_i32, %c0_i32_0 : i32, i32
  }
  func.func @transform_6(%arg0: i32) -> (i32, i32) {
    %c0_i32 = arith.constant 0 : i32
    %c0_i32_0 = arith.constant 0 : i32
    %c0_i32_1 = arith.constant 0 : i32
    return %c0_i32, %c0_i32_0 : i32, i32
  }
  func.func @transform_7(%arg0: i32) -> (i32, i32) {
    %c0_i32 = arith.constant 0 : i32
    %c0_i32_0 = arith.constant 0 : i32
    %c0_i32_1 = arith.constant 0 : i32
    return %c0_i32, %c0_i32_0 : i32, i32
  }
  func.func @transform_8(%arg0: i32) -> (i32, i32) {
    %c0_i32 = arith.constant 0 : i32
    %c0_i32_0 = arith.constant 0 : i32
    %c0_i32_1 = arith.constant 0 : i32
    return %c0_i32, %c0_i32_0 : i32, i32
  }
  func.func @transform_9(%arg0: i32) -> (i32, i32) {
    %c0_i32 = arith.constant 0 : i32
    %c0_i32_0 = arith.constant 0 : i32
    return %arg0, %c0_i32 : i32, i32
  }
}

</mosaic_0001>

<llo_original>
// kernel: multicnn_forward.1
$region0: #{multicnn_forward.1}
  #allocation0 [shape = 'u32[]', space=smem, size = 0x4, offset = 0x4, fixed_abs, tag = 'smem constant byte address 0x4 - core index']
  #allocation1 [shape = 'u32[72,128]{1,0:T(1,128)}', space=vmem, size = 0x9000, scoped, tag = 'internal scratch']
  %s0 = inlined_call_operand.vmem [shape: s32[16,16], index: 0, kind: input, shape index: {}]
  %s1 = inlined_call_operand.hbm [shape: f32[16,512], index: 1, kind: input, shape index: {}]
  %s2 = inlined_call_operand.vmem [shape: f32[1,512], index: 2, kind: input, shape index: {}]
  %s3 = inlined_call_operand.hbm [shape: bf16[512,256], index: 3, kind: input, shape index: {}]
  %s4 = inlined_call_operand.vmem [shape: f32[1,256], index: 4, kind: input, shape index: {}]
  %s5 = inlined_call_operand.hbm [shape: bf16[256,128], index: 5, kind: input, shape index: {}]
  %s6 = inlined_call_operand.vmem [shape: f32[1,128], index: 6, kind: input, shape index: {}]
  %s7 = inlined_call_operand.hbm [shape: bf16[128,128], index: 7, kind: input, shape index: {}]
  %s8 = inlined_call_operand.vmem [shape: f32[1,128], index: 8, kind: input, shape index: {}]
  %s9 = inlined_call_operand.vmem [shape: f32[16,128], index: 9, kind: output, shape index: {}]
  %s10 = sld [smem:[#allocation0]]
  $region62: #{multicnn_forward.1} parent=0
    _
  %s12 = ssub.s32 1, %s10
  %s13 = scalar_select 0, %s12, %s10
  $region1: #{multicnn_forward.1} parent=0
    #allocation2 [shape = 'u8[32768]{0}', space=vmem, size = 0x8000, scoped, tag = 'input window, operand 1, single buffered']
    #allocation3 [shape = 's32[1]{0}', space=sflag, size = 0x4, scoped, tag = 'scoped memory for multicnn_forward.1']
    #allocation4 [shape = 'u8[262144]{0}', space=vmem, size = 0x40000, scoped, tag = 'input window, operand 3, single buffered']
    #allocation5 [shape = 's32[1]{0}', space=sflag, size = 0x4, scoped, tag = 'scoped memory for multicnn_forward.1']
    #allocation6 [shape = 'u8[65536]{0}', space=vmem, size = 0x10000, scoped, tag = 'input window, operand 5, single buffered']
    #allocation7 [shape = 'u8[32768]{0}', space=vmem, size = 0x8000, scoped, tag = 'input window, operand 7, single buffered']
    #allocation8 [shape = 's32[1]{0}', space=sflag, size = 0x4, scoped, tag = 'scoped memory for multicnn_forward.1']
    %14 = vsyncpa [#allocation3], 0
    %15 = vsyncpa [#allocation5], 0
    %16 = vsyncpa [#allocation8], 0
    // Predicated region
    $region2: #{multicnn_forward.1} parent=1 // pred_check
      _
    $region3: #{multicnn_forward.1} parent=1 // pred_check_branch
      %18 = sbr.rel (0) target = $region5
    $region4: #{multicnn_forward.1} parent=1 // pred_region
      _
    $region5: #{multicnn_forward.1} parent=1 // pred_fallthru
      _
    // Predicated region
    $region6: #{multicnn_forward.1} parent=1 // pred_check
      _
    $region7: #{multicnn_forward.1} parent=1 // pred_check_branch
      %20 = sbr.rel (0) target = $region9
    $region8: #{multicnn_forward.1} parent=1 // pred_region
      %22 = vsyncadd [#allocation3], 0
      %s23 = sshll.u32 %s1, 4
      %s24 = int_to_ptr.hbm [resolvable:$true] %s23
      %s25 = sshll.u32 [#allocation2], 4
      %s26 = int_to_ptr.vmem [resolvable:$true] %s25
      %31 = dma.hbm_to_vmem [thread:$0]  %s24, 1024, %s26, [#allocation3], 512, 512, 32
    $region9: #{multicnn_forward.1} parent=1 // pred_fallthru
      _
    // Predicated region
    $region10: #{multicnn_forward.1} parent=1 // pred_check
      _
    $region11: #{multicnn_forward.1} parent=1 // pred_check_branch
      %33 = sbr.rel (0) target = $region13
    $region12: #{multicnn_forward.1} parent=1 // pred_region
      _
    $region13: #{multicnn_forward.1} parent=1 // pred_fallthru
      _
    // Predicated region
    $region14: #{multicnn_forward.1} parent=1 // pred_check
      _
    $region15: #{multicnn_forward.1} parent=1 // pred_check_branch
      %35 = sbr.rel (0) target = $region17
    $region16: #{multicnn_forward.1} parent=1 // pred_region
      %37 = vsyncadd [#allocation5], 0
      %s38 = sshll.u32 %s3, 4
      %s39 = int_to_ptr.hbm [resolvable:$true] %s38
      %s40 = sshll.u32 [#allocation4], 4
      %s41 = int_to_ptr.vmem [resolvable:$true] %s40
      %46 = dma.hbm_to_vmem [thread:$0]  %s39, 8192, %s41, [#allocation5], 128, 128, 8
    $region17: #{multicnn_forward.1} parent=1 // pred_fallthru
      _
    // Predicated region
    $region18: #{multicnn_forward.1} parent=1 // pred_check
      _
    $region19: #{multicnn_forward.1} parent=1 // pred_check_branch
      %48 = sbr.rel (0) target = $region21
    $region20: #{multicnn_forward.1} parent=1 // pred_region
      _
    $region21: #{multicnn_forward.1} parent=1 // pred_fallthru
      _
    // Predicated region
    $region22: #{multicnn_forward.1} parent=1 // pred_check
      _
    $region23: #{multicnn_forward.1} parent=1 // pred_check_branch
      %50 = sbr.rel (0) target = $region25
    $region24: #{multicnn_forward.1} parent=1 // pred_region
      %52 = vsyncadd [#allocation5], 0
      %s53 = sshll.u32 %s5, 4
      %s54 = int_to_ptr.hbm [resolvable:$true] %s53
      %s55 = sshll.u32 [#allocation6], 4
      %s56 = int_to_ptr.vmem [resolvable:$true] %s55
      %61 = dma.hbm_to_vmem [thread:$0]  %s54, 2048, %s56, [#allocation5], 64, 64, 4
    $region25: #{multicnn_forward.1} parent=1 // pred_fallthru
      _
    // Predicated region
    $region26: #{multicnn_forward.1} parent=1 // pred_check
      _
    $region27: #{multicnn_forward.1} parent=1 // pred_check_branch
      %63 = sbr.rel (0) target = $region29
    $region28: #{multicnn_forward.1} parent=1 // pred_region
      _
    $region29: #{multicnn_forward.1} parent=1 // pred_fallthru
      _
    // Predicated region
    $region30: #{multicnn_forward.1} parent=1 // pred_check
      _
    $region31: #{multicnn_forward.1} parent=1 // pred_check_branch
      %65 = sbr.rel (0) target = $region33
    $region32: #{multicnn_forward.1} parent=1 // pred_region
      %67 = vsyncadd [#allocation8], 0
      %s68 = sshll.u32 %s7, 4
      %s69 = int_to_ptr.hbm [resolvable:$true] %s68
      %s70 = sshll.u32 [#allocation7], 4
      %s71 = int_to_ptr.vmem [resolvable:$true] %s70
      %76 = dma.hbm_to_vmem [thread:$0]  %s69, 1024, %s71, [#allocation8], 64, 64, 4
    $region33: #{multicnn_forward.1} parent=1 // pred_fallthru
      _
    // Predicated region
    $region34: #{multicnn_forward.1} parent=1 // pred_check
      _
    $region35: #{multicnn_forward.1} parent=1 // pred_check_branch
      %78 = sbr.rel (0) target = $region37
    $region36: #{multicnn_forward.1} parent=1 // pred_region
      _
    $region37: #{multicnn_forward.1} parent=1 // pred_fallthru
      _
    // Predicated region
    $region38: #{multicnn_forward.1} parent=1 // pred_check
      _
    $region39: #{multicnn_forward.1} parent=1 // pred_check_branch
      %80 = sbr.rel (0) target = $region41
    $region40: #{multicnn_forward.1} parent=1 // pred_region
      %82 = dma.done [#allocation3], 1024
    $region41: #{multicnn_forward.1} parent=1 // pred_fallthru
      _
    // Predicated region
    $region42: #{multicnn_forward.1} parent=1 // pred_check
      _
    $region43: #{multicnn_forward.1} parent=1 // pred_check_branch
      %84 = sbr.rel (0) target = $region45
    $region44: #{multicnn_forward.1} parent=1 // pred_region
      %86 = dma.done [#allocation5], 8192
    $region45: #{multicnn_forward.1} parent=1 // pred_fallthru
      _
    // Predicated region
    $region46: #{multicnn_forward.1} parent=1 // pred_check
      _
    $region47: #{multicnn_forward.1} parent=1 // pred_check_branch
      %88 = sbr.rel (0) target = $region49
    $region48: #{multicnn_forward.1} parent=1 // pred_region
      %90 = dma.done [#allocation5], 2048
    $region49: #{multicnn_forward.1} parent=1 // pred_fallthru
      _
    // Predicated region
    $region50: #{multicnn_forward.1} parent=1 // pred_check
      _
    $region51: #{multicnn_forward.1} parent=1 // pred_check_branch
      %92 = sbr.rel (0) target = $region53
    $region52: #{multicnn_forward.1} parent=1 // pred_region
      %94 = dma.done [#allocation8], 1024
    $region53: #{multicnn_forward.1} parent=1 // pred_fallthru
      _
    %v95 = vld [vmem:[%s0] sm:$0xff]
    %v96 = vld [vmem:[%s0 + $0x8] sm:$0xff]
    %v97 = vcvt.s32.f32 %v95
    %v98 = vcvt.s32.f32 %v96
    %v99 = vld [vmem:[#allocation2] sm:$0xff]
    %v100 = vld [vmem:[#allocation2 + $0x8] sm:$0xff]
    %v101 = vld [vmem:[#allocation2 + $0x10] sm:$0xff]
    %v102 = vld [vmem:[#allocation2 + $0x18] sm:$0xff]
    %v103 = vld [vmem:[#allocation2 + $0x20] sm:$0xff]
    %v104 = vld [vmem:[#allocation2 + $0x28] sm:$0xff]
    %v105 = vld [vmem:[#allocation2 + $0x30] sm:$0xff]
    %v106 = vld [vmem:[#allocation2 + $0x38] sm:$0xff]
    %vm107 = vcmask 130048
    %v109 = vsel %vm107, %v97, 0
    %v112 = vsel %vm107, %v98, 0
    %114 = vmatpush.msra.mxu0 0.0
    %115 = vmatpush.msra.mxu0 0.0
    %116 = vmatpush.msra.mxu0 0.0
    %117 = vmatpush.msra.mxu0 0.0
    %118 = vmatpush.msra.mxu0 0.0
    %119 = vmatpush.msra.mxu0 0.0
    %120 = vmatpush.msra.mxu0 0.0
    %121 = vmatpush.msra.mxu0 0.0
    %122 = vmatpush.msra.mxu0 0.0
    %123 = vmatpush.msra.mxu0 0.0
    %124 = vmatpush.msra.mxu0 0.0
    %125 = vmatpush.msra.mxu0 0.0
    %126 = vmatpush.msra.mxu0 0.0
    %127 = vmatpush.msra.mxu0 0.0
    %128 = vmatpush.msra.mxu0 %v103
    %129 = vmatpush.msra.mxu0 %v99
    %130 = vmatmul.f32.gmra.mxu0 %v109
    %v131 = vpop.f32.mrf.mxu0
    %v132 = vadd.f32 0.0, %v131
    %133 = vmatmul.f32.gmra.mxu0 %v112
    %v134 = vpop.f32.mrf.mxu0
    %v135 = vadd.f32 0.0, %v134
    %136 = vdwg.mxu0
    %137 = vmatpush.msra.mxu0 0.0
    %138 = vmatpush.msra.mxu0 0.0
    %139 = vmatpush.msra.mxu0 0.0
    %140 = vmatpush.msra.mxu0 0.0
    %141 = vmatpush.msra.mxu0 0.0
    %142 = vmatpush.msra.mxu0 0.0
    %143 = vmatpush.msra.mxu0 0.0
    %144 = vmatpush.msra.mxu0 0.0
    %145 = vmatpush.msra.mxu0 0.0
    %146 = vmatpush.msra.mxu0 0.0
    %147 = vmatpush.msra.mxu0 0.0
    %148 = vmatpush.msra.mxu0 0.0
    %149 = vmatpush.msra.mxu0 0.0
    %150 = vmatpush.msra.mxu0 0.0
    %151 = vmatpush.msra.mxu0 %v104
    %152 = vmatpush.msra.mxu0 %v100
    %153 = vmatmul.f32.gmra.mxu0 %v109
    %v154 = vpop.f32.mrf.mxu0
    %v155 = vadd.f32 0.0, %v154
    %156 = vmatmul.f32.gmra.mxu0 %v112
    %v157 = vpop.f32.mrf.mxu0
    %v158 = vadd.f32 0.0, %v157
    %159 = vdwg.mxu0
    %160 = vmatpush.msra.mxu0 0.0
    %161 = vmatpush.msra.mxu0 0.0
    %162 = vmatpush.msra.mxu0 0.0
    %163 = vmatpush.msra.mxu0 0.0
    %164 = vmatpush.msra.mxu0 0.0
    %165 = vmatpush.msra.mxu0 0.0
    %166 = vmatpush.msra.mxu0 0.0
    %167 = vmatpush.msra.mxu0 0.0
    %168 = vmatpush.msra.mxu0 0.0
    %169 = vmatpush.msra.mxu0 0.0
    %170 = vmatpush.msra.mxu0 0.0
    %171 = vmatpush.msra.mxu0 0.0
    %172 = vmatpush.msra.mxu0 0.0
    %173 = vmatpush.msra.mxu0 0.0
    %174 = vmatpush.msra.mxu0 %v105
    %175 = vmatpush.msra.mxu0 %v101
    %176 = vmatmul.f32.gmra.mxu0 %v109
    %v177 = vpop.f32.mrf.mxu0
    %v178 = vadd.f32 0.0, %v177
    %179 = vmatmul.f32.gmra.mxu0 %v112
    %v180 = vpop.f32.mrf.mxu0
    %v181 = vadd.f32 0.0, %v180
    %182 = vdwg.mxu0
    %183 = vmatpush.msra.mxu0 0.0
    %184 = vmatpush.msra.mxu0 0.0
    %185 = vmatpush.msra.mxu0 0.0
    %186 = vmatpush.msra.mxu0 0.0
    %187 = vmatpush.msra.mxu0 0.0
    %188 = vmatpush.msra.mxu0 0.0
    %189 = vmatpush.msra.mxu0 0.0
    %190 = vmatpush.msra.mxu0 0.0
    %191 = vmatpush.msra.mxu0 0.0
    %192 = vmatpush.msra.mxu0 0.0
    %193 = vmatpush.msra.mxu0 0.0
    %194 = vmatpush.msra.mxu0 0.0
    %195 = vmatpush.msra.mxu0 0.0
    %196 = vmatpush.msra.mxu0 0.0
    %197 = vmatpush.msra.mxu0 %v106
    %198 = vmatpush.msra.mxu0 %v102
    %199 = vmatmul.f32.gmra.mxu0 %v109
    %v200 = vpop.f32.mrf.mxu0
    %v201 = vadd.f32 0.0, %v200
    %202 = vmatmul.f32.gmra.mxu0 %v112
    %v203 = vpop.f32.mrf.mxu0
    %v204 = vadd.f32 0.0, %v203
    %205 = vdwg.mxu0
    %v206 = vld [vmem:[%s2] sm:$0xf]
    %v208 = vperm.slane %v206, 0
    %v209 = vperm.slane %v206, 1
    %v210 = vperm.slane %v206, 2
    %v211 = vperm.slane %v206, 3
    %v216 = vsub.f32 %v132, %v208
    %v217 = vsub.f32 %v155, %v209
    %v218 = vsub.f32 %v178, %v210
    %v219 = vsub.f32 %v201, %v211
    %v220 = vsub.f32 %v135, %v208
    %v221 = vsub.f32 %v158, %v209
    %v222 = vsub.f32 %v181, %v210
    %v223 = vsub.f32 %v204, %v211
    %v224 = vand.u32 2147483647, %v216
    %v225 = vand.u32 2147483647, %v217
    %v226 = vand.u32 2147483647, %v218
    %v227 = vand.u32 2147483647, %v219
    %v228 = vand.u32 2147483647, %v220
    %v229 = vand.u32 2147483647, %v221
    %v230 = vand.u32 2147483647, %v222
    %v231 = vand.u32 2147483647, %v223
    %vm232 = vcmp.lt.f32.partialorder %v224, 0.5
    %vm233 = vcmp.lt.f32.partialorder %v225, 0.5
    %vm234 = vcmp.lt.f32.partialorder %v226, 0.5
    %vm235 = vcmp.lt.f32.partialorder %v227, 0.5
    %vm236 = vcmp.lt.f32.partialorder %v228, 0.5
    %vm237 = vcmp.lt.f32.partialorder %v229, 0.5
    %vm238 = vcmp.lt.f32.partialorder %v230, 0.5
    %vm239 = vcmp.lt.f32.partialorder %v231, 0.5
    %v240 = vsel %vm232, 1.0, 0.0
    %v241 = vsel %vm233, 1.0, 0.0
    %v242 = vsel %vm234, 1.0, 0.0
    %v243 = vsel %vm235, 1.0, 0.0
    %v244 = vsel %vm236, 1.0, 0.0
    %v245 = vsel %vm237, 1.0, 0.0
    %v246 = vsel %vm238, 1.0, 0.0
    %v247 = vsel %vm239, 1.0, 0.0
    %v248 = vpack.c.bf16 %v244, %v240
    %v249 = vpack.c.bf16 %v245, %v241
    %v250 = vpack.c.bf16 %v246, %v242
    %v251 = vpack.c.bf16 %v247, %v243
    %v252 = vld [vmem:[#allocation4] sm:$0xff]
    %v253 = vld [vmem:[#allocation4 + $0x8] sm:$0xff]
    %v254 = vld [vmem:[#allocation4 + $0x10] sm:$0xff]
    %v255 = vld [vmem:[#allocation4 + $0x18] sm:$0xff]
    %v256 = vld [vmem:[#allocation4 + $0x20] sm:$0xff]
    %v257 = vld [vmem:[#allocation4 + $0x28] sm:$0xff]
    %v258 = vld [vmem:[#allocation4 + $0x30] sm:$0xff]
    %v259 = vld [vmem:[#allocation4 + $0x38] sm:$0xff]
    %v260 = vld [vmem:[#allocation4 + $0x40] sm:$0xff]
    %v261 = vld [vmem:[#allocation4 + $0x48] sm:$0xff]
    %v262 = vld [vmem:[#allocation4 + $0x50] sm:$0xff]
    %v263 = vld [vmem:[#allocation4 + $0x58] sm:$0xff]
    %v264 = vld [vmem:[#allocation4 + $0x60] sm:$0xff]
    %v265 = vld [vmem:[#allocation4 + $0x68] sm:$0xff]
    %v266 = vld [vmem:[#allocation4 + $0x70] sm:$0xff]
    %v267 = vld [vmem:[#allocation4 + $0x78] sm:$0xff]
    %v268 = vld [vmem:[#allocation4 + $0x80] sm:$0xff]
    %v269 = vld [vmem:[#allocation4 + $0x88] sm:$0xff]
    %v270 = vld [vmem:[#allocation4 + $0x90] sm:$0xff]
    %v271 = vld [vmem:[#allocation4 + $0x98] sm:$0xff]
    %v272 = vld [vmem:[#allocation4 + $0xa0] sm:$0xff]
    %v273 = vld [vmem:[#allocation4 + $0xa8] sm:$0xff]
    %v274 = vld [vmem:[#allocation4 + $0xb0] sm:$0xff]
    %v275 = vld [vmem:[#allocation4 + $0xb8] sm:$0xff]
    %v276 = vld [vmem:[#allocation4 + $0xc0] sm:$0xff]
    %v277 = vld [vmem:[#allocation4 + $0xc8] sm:$0xff]
    %v278 = vld [vmem:[#allocation4 + $0xd0] sm:$0xff]
    %v279 = vld [vmem:[#allocation4 + $0xd8] sm:$0xff]
    %v280 = vld [vmem:[#allocation4 + $0xe0] sm:$0xff]
    %v281 = vld [vmem:[#allocation4 + $0xe8] sm:$0xff]
    %v282 = vld [vmem:[#allocation4 + $0xf0] sm:$0xff]
    %v283 = vld [vmem:[#allocation4 + $0xf8] sm:$0xff]
    %v284 = vld [vmem:[#allocation4 + $0x100] sm:$0xff]
    %v285 = vld [vmem:[#allocation4 + $0x108] sm:$0xff]
    %v286 = vld [vmem:[#allocation4 + $0x110] sm:$0xff]
    %v287 = vld [vmem:[#allocation4 + $0x118] sm:$0xff]
    %v288 = vld [vmem:[#allocation4 + $0x120] sm:$0xff]
    %v289 = vld [vmem:[#allocation4 + $0x128] sm:$0xff]
    %v290 = vld [vmem:[#allocation4 + $0x130] sm:$0xff]
    %v291 = vld [vmem:[#allocation4 + $0x138] sm:$0xff]
    %v292 = vld [vmem:[#allocation4 + $0x140] sm:$0xff]
    %v293 = vld [vmem:[#allocation4 + $0x148] sm:$0xff]
    %v294 = vld [vmem:[#allocation4 + $0x150] sm:$0xff]
    %v295 = vld [vmem:[#allocation4 + $0x158] sm:$0xff]
    %v296 = vld [vmem:[#allocation4 + $0x160] sm:$0xff]
    %v297 = vld [vmem:[#allocation4 + $0x168] sm:$0xff]
    %v298 = vld [vmem:[#allocation4 + $0x170] sm:$0xff]
    %v299 = vld [vmem:[#allocation4 + $0x178] sm:$0xff]
    %v300 = vld [vmem:[#allocation4 + $0x180] sm:$0xff]
    %v301 = vld [vmem:[#allocation4 + $0x188] sm:$0xff]
    %v302 = vld [vmem:[#allocation4 + $0x190] sm:$0xff]
    %v303 = vld [vmem:[#allocation4 + $0x198] sm:$0xff]
    %v304 = vld [vmem:[#allocation4 + $0x1a0] sm:$0xff]
    %v305 = vld [vmem:[#allocation4 + $0x1a8] sm:$0xff]
    %v306 = vld [vmem:[#allocation4 + $0x1b0] sm:$0xff]
    %v307 = vld [vmem:[#allocation4 + $0x1b8] sm:$0xff]
    %v308 = vld [vmem:[#allocation4 + $0x1c0] sm:$0xff]
    %v309 = vld [vmem:[#allocation4 + $0x1c8] sm:$0xff]
    %v310 = vld [vmem:[#allocation4 + $0x1d0] sm:$0xff]
    %v311 = vld [vmem:[#allocation4 + $0x1d8] sm:$0xff]
    %v312 = vld [vmem:[#allocation4 + $0x1e0] sm:$0xff]
    %v313 = vld [vmem:[#allocation4 + $0x1e8] sm:$0xff]
    %v314 = vld [vmem:[#allocation4 + $0x1f0] sm:$0xff]
    %v315 = vld [vmem:[#allocation4 + $0x1f8] sm:$0xff]
    %v316 = vld [vmem:[%s4] sm:$0x3]
    %v318 = vperm.slane %v316, 0
    %v319 = vperm.slane %v316, 1
    %v386 = vunpack.c.l.b16 %v252
    %v387 = vunpack.c.h.b16 %v252
    %v388 = vunpack.c.l.b16 %v253
    %v389 = vunpack.c.h.b16 %v253
    %v390 = vunpack.c.l.b16 %v254
    %v391 = vunpack.c.h.b16 %v254
    %v392 = vunpack.c.l.b16 %v255
    %v393 = vunpack.c.h.b16 %v255
    %v394 = vunpack.c.l.b16 %v256
    %v395 = vunpack.c.h.b16 %v256
    %v396 = vunpack.c.l.b16 %v257
    %v397 = vunpack.c.h.b16 %v257
    %v398 = vunpack.c.l.b16 %v258
    %v399 = vunpack.c.h.b16 %v258
    %v400 = vunpack.c.l.b16 %v259
    %v401 = vunpack.c.h.b16 %v259
    %v402 = vunpack.c.l.b16 %v260
    %v403 = vunpack.c.h.b16 %v260
    %v404 = vunpack.c.l.b16 %v261
    %v405 = vunpack.c.h.b16 %v261
    %v406 = vunpack.c.l.b16 %v262
    %v407 = vunpack.c.h.b16 %v262
    %v408 = vunpack.c.l.b16 %v263
    %v409 = vunpack.c.h.b16 %v263
    %v410 = vunpack.c.l.b16 %v264
    %v411 = vunpack.c.h.b16 %v264
    %v412 = vunpack.c.l.b16 %v265
    %v413 = vunpack.c.h.b16 %v265
    %v414 = vunpack.c.l.b16 %v266
    %v415 = vunpack.c.h.b16 %v266
    %v416 = vunpack.c.l.b16 %v267
    %v417 = vunpack.c.h.b16 %v267
    %v418 = vunpack.c.l.b16 %v268
    %v419 = vunpack.c.h.b16 %v268
    %v420 = vunpack.c.l.b16 %v269
    %v421 = vunpack.c.h.b16 %v269
    %v422 = vunpack.c.l.b16 %v270
    %v423 = vunpack.c.h.b16 %v270
    %v424 = vunpack.c.l.b16 %v271
    %v425 = vunpack.c.h.b16 %v271
    %v426 = vunpack.c.l.b16 %v272
    %v427 = vunpack.c.h.b16 %v272
    %v428 = vunpack.c.l.b16 %v273
    %v429 = vunpack.c.h.b16 %v273
    %v430 = vunpack.c.l.b16 %v274
    %v431 = vunpack.c.h.b16 %v274
    %v432 = vunpack.c.l.b16 %v275
    %v433 = vunpack.c.h.b16 %v275
    %v434 = vunpack.c.l.b16 %v276
    %v435 = vunpack.c.h.b16 %v276
    %v436 = vunpack.c.l.b16 %v277
    %v437 = vunpack.c.h.b16 %v277
    %v438 = vunpack.c.l.b16 %v278
    %v439 = vunpack.c.h.b16 %v278
    %v440 = vunpack.c.l.b16 %v279
    %v441 = vunpack.c.h.b16 %v279
    %v442 = vunpack.c.l.b16 %v280
    %v443 = vunpack.c.h.b16 %v280
    %v444 = vunpack.c.l.b16 %v281
    %v445 = vunpack.c.h.b16 %v281
    %v446 = vunpack.c.l.b16 %v282
    %v447 = vunpack.c.h.b16 %v282
    %v448 = vunpack.c.l.b16 %v283
    %v449 = vunpack.c.h.b16 %v283
    %v450 = vunpack.c.l.b16 %v284
    %v451 = vunpack.c.h.b16 %v284
    %v452 = vunpack.c.l.b16 %v285
    %v453 = vunpack.c.h.b16 %v285
    %v454 = vunpack.c.l.b16 %v286
    %v455 = vunpack.c.h.b16 %v286
    %v456 = vunpack.c.l.b16 %v287
    %v457 = vunpack.c.h.b16 %v287
    %v458 = vunpack.c.l.b16 %v288
    %v459 = vunpack.c.h.b16 %v288
    %v460 = vunpack.c.l.b16 %v289
    %v461 = vunpack.c.h.b16 %v289
    %v462 = vunpack.c.l.b16 %v290
    %v463 = vunpack.c.h.b16 %v290
    %v464 = vunpack.c.l.b16 %v291
    %v465 = vunpack.c.h.b16 %v291
    %v466 = vunpack.c.l.b16 %v292
    %v467 = vunpack.c.h.b16 %v292
    %v468 = vunpack.c.l.b16 %v293
    %v469 = vunpack.c.h.b16 %v293
    %v470 = vunpack.c.l.b16 %v294
    %v471 = vunpack.c.h.b16 %v294
    %v472 = vunpack.c.l.b16 %v295
    %v473 = vunpack.c.h.b16 %v295
    %v474 = vunpack.c.l.b16 %v296
    %v475 = vunpack.c.h.b16 %v296
    %v476 = vunpack.c.l.b16 %v297
    %v477 = vunpack.c.h.b16 %v297
    %v478 = vunpack.c.l.b16 %v298
    %v479 = vunpack.c.h.b16 %v298
    %v480 = vunpack.c.l.b16 %v299
    %v481 = vunpack.c.h.b16 %v299
    %v482 = vunpack.c.l.b16 %v300
    %v483 = vunpack.c.h.b16 %v300
    %v484 = vunpack.c.l.b16 %v301
    %v485 = vunpack.c.h.b16 %v301
    %v486 = vunpack.c.l.b16 %v302
    %v487 = vunpack.c.h.b16 %v302
    %v488 = vunpack.c.l.b16 %v303
    %v489 = vunpack.c.h.b16 %v303
    %v490 = vunpack.c.l.b16 %v304
    %v491 = vunpack.c.h.b16 %v304
    %v492 = vunpack.c.l.b16 %v305
    %v493 = vunpack.c.h.b16 %v305
    %v494 = vunpack.c.l.b16 %v306
    %v495 = vunpack.c.h.b16 %v306
    %v496 = vunpack.c.l.b16 %v307
    %v497 = vunpack.c.h.b16 %v307
    %v498 = vunpack.c.l.b16 %v308
    %v499 = vunpack.c.h.b16 %v308
    %v500 = vunpack.c.l.b16 %v309
    %v501 = vunpack.c.h.b16 %v309
    %v502 = vunpack.c.l.b16 %v310
    %v503 = vunpack.c.h.b16 %v310
    %v504 = vunpack.c.l.b16 %v311
    %v505 = vunpack.c.h.b16 %v311
    %v506 = vunpack.c.l.b16 %v312
    %v507 = vunpack.c.h.b16 %v312
    %v508 = vunpack.c.l.b16 %v313
    %v509 = vunpack.c.h.b16 %v313
    %v510 = vunpack.c.l.b16 %v314
    %v511 = vunpack.c.h.b16 %v314
    %v512 = vunpack.c.l.b16 %v315
    %v513 = vunpack.c.h.b16 %v315
    %v514 = vpack.c.b16 %v388, %v386
    %v515 = vpack.c.b16 %v389, %v387
    %v516 = vpack.c.b16 %v392, %v390
    %v517 = vpack.c.b16 %v393, %v391
    %v518 = vpack.c.b16 %v396, %v394
    %v519 = vpack.c.b16 %v397, %v395
    %v520 = vpack.c.b16 %v400, %v398
    %v521 = vpack.c.b16 %v401, %v399
    %v522 = vpack.c.b16 %v404, %v402
    %v523 = vpack.c.b16 %v405, %v403
    %v524 = vpack.c.b16 %v408, %v406
    %v525 = vpack.c.b16 %v409, %v407
    %v526 = vpack.c.b16 %v412, %v410
    %v527 = vpack.c.b16 %v413, %v411
    %v528 = vpack.c.b16 %v416, %v414
    %v529 = vpack.c.b16 %v417, %v415
    %v530 = vpack.c.b16 %v420, %v418
    %v531 = vpack.c.b16 %v421, %v419
    %v532 = vpack.c.b16 %v424, %v422
    %v533 = vpack.c.b16 %v425, %v423
    %v534 = vpack.c.b16 %v428, %v426
    %v535 = vpack.c.b16 %v429, %v427
    %v536 = vpack.c.b16 %v432, %v430
    %v537 = vpack.c.b16 %v433, %v431
    %v538 = vpack.c.b16 %v436, %v434
    %v539 = vpack.c.b16 %v437, %v435
    %v540 = vpack.c.b16 %v440, %v438
    %v541 = vpack.c.b16 %v441, %v439
    %v542 = vpack.c.b16 %v444, %v442
    %v543 = vpack.c.b16 %v445, %v443
    %v544 = vpack.c.b16 %v448, %v446
    %v545 = vpack.c.b16 %v449, %v447
    %v546 = vpack.c.b16 %v452, %v450
    %v547 = vpack.c.b16 %v453, %v451
    %v548 = vpack.c.b16 %v456, %v454
    %v549 = vpack.c.b16 %v457, %v455
    %v550 = vpack.c.b16 %v460, %v458
    %v551 = vpack.c.b16 %v461, %v459
    %v552 = vpack.c.b16 %v464, %v462
    %v553 = vpack.c.b16 %v465, %v463
    %v554 = vpack.c.b16 %v468, %v466
    %v555 = vpack.c.b16 %v469, %v467
    %v556 = vpack.c.b16 %v472, %v470
    %v557 = vpack.c.b16 %v473, %v471
    %v558 = vpack.c.b16 %v476, %v474
    %v559 = vpack.c.b16 %v477, %v475
    %v560 = vpack.c.b16 %v480, %v478
    %v561 = vpack.c.b16 %v481, %v479
    %v562 = vpack.c.b16 %v484, %v482
    %v563 = vpack.c.b16 %v485, %v483
    %v564 = vpack.c.b16 %v488, %v486
    %v565 = vpack.c.b16 %v489, %v487
    %v566 = vpack.c.b16 %v492, %v490
    %v567 = vpack.c.b16 %v493, %v491
    %v568 = vpack.c.b16 %v496, %v494
    %v569 = vpack.c.b16 %v497, %v495
    %v570 = vpack.c.b16 %v500, %v498
    %v571 = vpack.c.b16 %v501, %v499
    %v572 = vpack.c.b16 %v504, %v502
    %v573 = vpack.c.b16 %v505, %v503
    %v574 = vpack.c.b16 %v508, %v506
    %v575 = vpack.c.b16 %v509, %v507
    %v576 = vpack.c.b16 %v512, %v510
    %v577 = vpack.c.b16 %v513, %v511
    %642 = vmatpush.bf16.msra.mxu0 %v528
    %643 = vmatpush.bf16.msra.mxu0 %v526
    %644 = vmatpush.bf16.msra.mxu0 %v524
    %645 = vmatpush.bf16.msra.mxu0 %v522
    %646 = vmatpush.bf16.msra.mxu0 %v520
    %647 = vmatpush.bf16.msra.mxu0 %v518
    %648 = vmatpush.bf16.msra.mxu0 %v516
    %649 = vmatpush.bf16.msra.mxu0 %v514
    %650 = vmatmul.bf16.gmra.mxu0 %v248
    %v651 = vpop.f32.mrf.mxu0
    %v652 = vadd.f32 %v318, %v651
    %v653 = vpop.f32.mrf.mxu0
    %v654 = vadd.f32 %v318, %v653
    %655 = vdwg.mxu0
    %656 = vmatpush.bf16.msra.mxu0 %v544
    %657 = vmatpush.bf16.msra.mxu0 %v542
    %658 = vmatpush.bf16.msra.mxu0 %v540
    %659 = vmatpush.bf16.msra.mxu0 %v538
    %660 = vmatpush.bf16.msra.mxu0 %v536
    %661 = vmatpush.bf16.msra.mxu0 %v534
    %662 = vmatpush.bf16.msra.mxu0 %v532
    %663 = vmatpush.bf16.msra.mxu0 %v530
    %664 = vmatmul.bf16.gmra.mxu0 %v249
    %v665 = vpop.f32.mrf.mxu0
    %v666 = vadd.f32 %v652, %v665
    %v667 = vpop.f32.mrf.mxu0
    %v668 = vadd.f32 %v654, %v667
    %669 = vdwg.mxu0
    %670 = vmatpush.bf16.msra.mxu0 %v560
    %671 = vmatpush.bf16.msra.mxu0 %v558
    %672 = vmatpush.bf16.msra.mxu0 %v556
    %673 = vmatpush.bf16.msra.mxu0 %v554
    %674 = vmatpush.bf16.msra.mxu0 %v552
    %675 = vmatpush.bf16.msra.mxu0 %v550
    %676 = vmatpush.bf16.msra.mxu0 %v548
    %677 = vmatpush.bf16.msra.mxu0 %v546
    %678 = vmatmul.bf16.gmra.mxu0 %v250
    %v679 = vpop.f32.mrf.mxu0
    %v680 = vadd.f32 %v666, %v679
    %v681 = vpop.f32.mrf.mxu0
    %v682 = vadd.f32 %v668, %v681
    %683 = vdwg.mxu0
    %684 = vmatpush.bf16.msra.mxu0 %v576
    %685 = vmatpush.bf16.msra.mxu0 %v574
    %686 = vmatpush.bf16.msra.mxu0 %v572
    %687 = vmatpush.bf16.msra.mxu0 %v570
    %688 = vmatpush.bf16.msra.mxu0 %v568
    %689 = vmatpush.bf16.msra.mxu0 %v566
    %690 = vmatpush.bf16.msra.mxu0 %v564
    %691 = vmatpush.bf16.msra.mxu0 %v562
    %692 = vmatmul.bf16.gmra.mxu0 %v251
    %v693 = vpop.f32.mrf.mxu0
    %v694 = vadd.f32 %v680, %v693
    %v695 = vpop.f32.mrf.mxu0
    %v696 = vadd.f32 %v682, %v695
    %697 = vdwg.mxu0
    %698 = vmatpush.bf16.msra.mxu0 %v529
    %699 = vmatpush.bf16.msra.mxu0 %v527
    %700 = vmatpush.bf16.msra.mxu0 %v525
    %701 = vmatpush.bf16.msra.mxu0 %v523
    %702 = vmatpush.bf16.msra.mxu0 %v521
    %703 = vmatpush.bf16.msra.mxu0 %v519
    %704 = vmatpush.bf16.msra.mxu0 %v517
    %705 = vmatpush.bf16.msra.mxu0 %v515
    %706 = vmatmul.bf16.gmra.mxu0 %v248
    %v707 = vpop.f32.mrf.mxu0
    %v708 = vadd.f32 %v319, %v707
    %v709 = vpop.f32.mrf.mxu0
    %v710 = vadd.f32 %v319, %v709
    %711 = vdwg.mxu0
    %712 = vmatpush.bf16.msra.mxu0 %v545
    %713 = vmatpush.bf16.msra.mxu0 %v543
    %714 = vmatpush.bf16.msra.mxu0 %v541
    %715 = vmatpush.bf16.msra.mxu0 %v539
    %716 = vmatpush.bf16.msra.mxu0 %v537
    %717 = vmatpush.bf16.msra.mxu0 %v535
    %718 = vmatpush.bf16.msra.mxu0 %v533
    %719 = vmatpush.bf16.msra.mxu0 %v531
    %720 = vmatmul.bf16.gmra.mxu0 %v249
    %v721 = vpop.f32.mrf.mxu0
    %v722 = vadd.f32 %v708, %v721
    %v723 = vpop.f32.mrf.mxu0
    %v724 = vadd.f32 %v710, %v723
    %725 = vdwg.mxu0
    %726 = vmatpush.bf16.msra.mxu0 %v561
    %727 = vmatpush.bf16.msra.mxu0 %v559
    %728 = vmatpush.bf16.msra.mxu0 %v557
    %729 = vmatpush.bf16.msra.mxu0 %v555
    %730 = vmatpush.bf16.msra.mxu0 %v553
    %731 = vmatpush.bf16.msra.mxu0 %v551
    %732 = vmatpush.bf16.msra.mxu0 %v549
    %733 = vmatpush.bf16.msra.mxu0 %v547
    %734 = vmatmul.bf16.gmra.mxu0 %v250
    %v735 = vpop.f32.mrf.mxu0
    %v736 = vadd.f32 %v722, %v735
    %v737 = vpop.f32.mrf.mxu0
    %v738 = vadd.f32 %v724, %v737
    %739 = vdwg.mxu0
    %740 = vmatpush.bf16.msra.mxu0 %v577
    %741 = vmatpush.bf16.msra.mxu0 %v575
    %742 = vmatpush.bf16.msra.mxu0 %v573
    %743 = vmatpush.bf16.msra.mxu0 %v571
    %744 = vmatpush.bf16.msra.mxu0 %v569
    %745 = vmatpush.bf16.msra.mxu0 %v567
    %746 = vmatpush.bf16.msra.mxu0 %v565
    %747 = vmatpush.bf16.msra.mxu0 %v563
    %748 = vmatmul.bf16.gmra.mxu0 %v251
    %v749 = vpop.f32.mrf.mxu0
    %v750 = vadd.f32 %v736, %v749
    %v751 = vpop.f32.mrf.mxu0
    %v752 = vadd.f32 %v738, %v751
    %753 = vdwg.mxu0
    %v754 = vmax.f32 %v694, 0.0
    %v755 = vmax.f32 %v750, 0.0
    %v756 = vmax.f32 %v696, 0.0
    %v757 = vmax.f32 %v752, 0.0
    %v758 = vpack.c.bf16 %v756, %v754
    %v759 = vpack.c.bf16 %v757, %v755
    %v760 = vld [vmem:[#allocation6] sm:$0xf]
    %v761 = vld [vmem:[#allocation6 + $0x4] sm:$0xf]
    %v762 = vld [vmem:[#allocation6 + $0x8] sm:$0xf]
    %v763 = vld [vmem:[#allocation6 + $0xc] sm:$0xf]
    %v764 = vld [vmem:[#allocation6 + $0x10] sm:$0xf]
    %v765 = vld [vmem:[#allocation6 + $0x14] sm:$0xf]
    %v766 = vld [vmem:[#allocation6 + $0x18] sm:$0xf]
    %v767 = vld [vmem:[#allocation6 + $0x1c] sm:$0xf]
    %v768 = vld [vmem:[#allocation6 + $0x20] sm:$0xf]
    %v769 = vld [vmem:[#allocation6 + $0x24] sm:$0xf]
    %v770 = vld [vmem:[#allocation6 + $0x28] sm:$0xf]
    %v771 = vld [vmem:[#allocation6 + $0x2c] sm:$0xf]
    %v772 = vld [vmem:[#allocation6 + $0x30] sm:$0xf]
    %v773 = vld [vmem:[#allocation6 + $0x34] sm:$0xf]
    %v774 = vld [vmem:[#allocation6 + $0x38] sm:$0xf]
    %v775 = vld [vmem:[#allocation6 + $0x3c] sm:$0xf]
    %v776 = vld [vmem:[#allocation6 + $0x40] sm:$0xf]
    %v777 = vld [vmem:[#allocation6 + $0x44] sm:$0xf]
    %v778 = vld [vmem:[#allocation6 + $0x48] sm:$0xf]
    %v779 = vld [vmem:[#allocation6 + $0x4c] sm:$0xf]
    %v780 = vld [vmem:[#allocation6 + $0x50] sm:$0xf]
    %v781 = vld [vmem:[#allocation6 + $0x54] sm:$0xf]
    %v782 = vld [vmem:[#allocation6 + $0x58] sm:$0xf]
    %v783 = vld [vmem:[#allocation6 + $0x5c] sm:$0xf]
    %v784 = vld [vmem:[#allocation6 + $0x60] sm:$0xf]
    %v785 = vld [vmem:[#allocation6 + $0x64] sm:$0xf]
    %v786 = vld [vmem:[#allocation6 + $0x68] sm:$0xf]
    %v787 = vld [vmem:[#allocation6 + $0x6c] sm:$0xf]
    %v788 = vld [vmem:[#allocation6 + $0x70] sm:$0xf]
    %v789 = vld [vmem:[#allocation6 + $0x74] sm:$0xf]
    %v790 = vld [vmem:[#allocation6 + $0x78] sm:$0xf]
    %v791 = vld [vmem:[#allocation6 + $0x7c] sm:$0xf]
    %v792 = vld [vmem:[%s6] sm:$0x1]
    %v794 = vperm.slane %v792, 0
    %v828 = vunpack.c.l.b16 %v760
    %v829 = vunpack.c.l.b16 %v761
    %v830 = vunpack.c.l.b16 %v762
    %v831 = vunpack.c.l.b16 %v763
    %v832 = vunpack.c.l.b16 %v764
    %v833 = vunpack.c.l.b16 %v765
    %v834 = vunpack.c.l.b16 %v766
    %v835 = vunpack.c.l.b16 %v767
    %v836 = vunpack.c.l.b16 %v768
    %v837 = vunpack.c.l.b16 %v769
    %v838 = vunpack.c.l.b16 %v770
    %v839 = vunpack.c.l.b16 %v771
    %v840 = vunpack.c.l.b16 %v772
    %v841 = vunpack.c.l.b16 %v773
    %v842 = vunpack.c.l.b16 %v774
    %v843 = vunpack.c.l.b16 %v775
    %v844 = vunpack.c.l.b16 %v776
    %v845 = vunpack.c.l.b16 %v777
    %v846 = vunpack.c.l.b16 %v778
    %v847 = vunpack.c.l.b16 %v779
    %v848 = vunpack.c.l.b16 %v780
    %v849 = vunpack.c.l.b16 %v781
    %v850 = vunpack.c.l.b16 %v782
    %v851 = vunpack.c.l.b16 %v783
    %v852 = vunpack.c.l.b16 %v784
    %v853 = vunpack.c.l.b16 %v785
    %v854 = vunpack.c.l.b16 %v786
    %v855 = vunpack.c.l.b16 %v787
    %v856 = vunpack.c.l.b16 %v788
    %v857 = vunpack.c.l.b16 %v789
    %v858 = vunpack.c.l.b16 %v790
    %v859 = vunpack.c.l.b16 %v791
    %v860 = vpack.c.b16 %v829, %v828
    %v861 = vpack.c.b16 %v831, %v830
    %v862 = vpack.c.b16 %v833, %v832
    %v863 = vpack.c.b16 %v835, %v834
    %v864 = vpack.c.b16 %v837, %v836
    %v865 = vpack.c.b16 %v839, %v838
    %v866 = vpack.c.b16 %v841, %v840
    %v867 = vpack.c.b16 %v843, %v842
    %v868 = vpack.c.b16 %v845, %v844
    %v869 = vpack.c.b16 %v847, %v846
    %v870 = vpack.c.b16 %v849, %v848
    %v871 = vpack.c.b16 %v851, %v850
    %v872 = vpack.c.b16 %v853, %v852
    %v873 = vpack.c.b16 %v855, %v854
    %v874 = vpack.c.b16 %v857, %v856
    %v875 = vpack.c.b16 %v859, %v858
    %892 = vmatpush.bf16.msra.mxu0 %v867
    %893 = vmatpush.bf16.msra.mxu0 %v866
    %894 = vmatpush.bf16.msra.mxu0 %v865
    %895 = vmatpush.bf16.msra.mxu0 %v864
    %896 = vmatpush.bf16.msra.mxu0 %v863
    %897 = vmatpush.bf16.msra.mxu0 %v862
    %898 = vmatpush.bf16.msra.mxu0 %v861
    %899 = vmatpush.bf16.msra.mxu0 %v860
    %900 = vmatmul.bf16.gmra.mxu0 %v758
    %v901 = vpop.f32.mrf.mxu0
    %v902 = vadd.f32 %v794, %v901
    %v903 = vpop.f32.mrf.mxu0
    %v904 = vadd.f32 %v794, %v903
    %905 = vdwg.mxu0
    %906 = vmatpush.bf16.msra.mxu0 %v875
    %907 = vmatpush.bf16.msra.mxu0 %v874
    %908 = vmatpush.bf16.msra.mxu0 %v873
    %909 = vmatpush.bf16.msra.mxu0 %v872
    %910 = vmatpush.bf16.msra.mxu0 %v871
    %911 = vmatpush.bf16.msra.mxu0 %v870
    %912 = vmatpush.bf16.msra.mxu0 %v869
    %913 = vmatpush.bf16.msra.mxu0 %v868
    %914 = vmatmul.bf16.gmra.mxu0 %v759
    %v915 = vpop.f32.mrf.mxu0
    %v916 = vadd.f32 %v902, %v915
    %v917 = vpop.f32.mrf.mxu0
    %v918 = vadd.f32 %v904, %v917
    %919 = vdwg.mxu0
    %v920 = vmax.f32 %v916, 0.0
    %v921 = vmax.f32 %v918, 0.0
    %v922 = vpack.c.bf16 %v921, %v920
    %v923 = vld [vmem:[#allocation7] sm:$0xf]
    %v924 = vld [vmem:[#allocation7 + $0x4] sm:$0xf]
    %v925 = vld [vmem:[#allocation7 + $0x8] sm:$0xf]
    %v926 = vld [vmem:[#allocation7 + $0xc] sm:$0xf]
    %v927 = vld [vmem:[#allocation7 + $0x10] sm:$0xf]
    %v928 = vld [vmem:[#allocation7 + $0x14] sm:$0xf]
    %v929 = vld [vmem:[#allocation7 + $0x18] sm:$0xf]
    %v930 = vld [vmem:[#allocation7 + $0x1c] sm:$0xf]
    %v931 = vld [vmem:[#allocation7 + $0x20] sm:$0xf]
    %v932 = vld [vmem:[#allocation7 + $0x24] sm:$0xf]
    %v933 = vld [vmem:[#allocation7 + $0x28] sm:$0xf]
    %v934 = vld [vmem:[#allocation7 + $0x2c] sm:$0xf]
    %v935 = vld [vmem:[#allocation7 + $0x30] sm:$0xf]
    %v936 = vld [vmem:[#allocation7 + $0x34] sm:$0xf]
    %v937 = vld [vmem:[#allocation7 + $0x38] sm:$0xf]
    %v938 = vld [vmem:[#allocation7 + $0x3c] sm:$0xf]
    %v939 = vld [vmem:[%s8] sm:$0x1]
    %v941 = vperm.slane %v939, 0
    %v959 = vunpack.c.l.b16 %v923
    %v960 = vunpack.c.l.b16 %v924
    %v961 = vunpack.c.l.b16 %v925
    %v962 = vunpack.c.l.b16 %v926
    %v963 = vunpack.c.l.b16 %v927
    %v964 = vunpack.c.l.b16 %v928
    %v965 = vunpack.c.l.b16 %v929
    %v966 = vunpack.c.l.b16 %v930
    %v967 = vunpack.c.l.b16 %v931
    %v968 = vunpack.c.l.b16 %v932
    %v969 = vunpack.c.l.b16 %v933
    %v970 = vunpack.c.l.b16 %v934
    %v971 = vunpack.c.l.b16 %v935
    %v972 = vunpack.c.l.b16 %v936
    %v973 = vunpack.c.l.b16 %v937
    %v974 = vunpack.c.l.b16 %v938
    %v975 = vpack.c.b16 %v960, %v959
    %v976 = vpack.c.b16 %v962, %v961
    %v977 = vpack.c.b16 %v964, %v963
    %v978 = vpack.c.b16 %v966, %v965
    %v979 = vpack.c.b16 %v968, %v967
    %v980 = vpack.c.b16 %v970, %v969
    %v981 = vpack.c.b16 %v972, %v971
    %v982 = vpack.c.b16 %v974, %v973
    %991 = vmatpush.bf16.msra.mxu0 %v982
    %992 = vmatpush.bf16.msra.mxu0 %v981
    %993 = vmatpush.bf16.msra.mxu0 %v980
    %994 = vmatpush.bf16.msra.mxu0 %v979
    %995 = vmatpush.bf16.msra.mxu0 %v978
    %996 = vmatpush.bf16.msra.mxu0 %v977
    %997 = vmatpush.bf16.msra.mxu0 %v976
    %998 = vmatpush.bf16.msra.mxu0 %v975
    %999 = vmatmul.bf16.gmra.mxu0 %v922
    %v1000 = vpop.f32.mrf.mxu0
    %v1001 = vadd.f32 %v941, %v1000
    %v1002 = vpop.f32.mrf.mxu0
    %v1003 = vadd.f32 %v941, %v1002
    %1004 = vdwg.mxu0
    %1005 = vst [vmem:[%s9] sm:$0xff] %v1001
    %1006 = vst [vmem:[%s9 + $0x8] sm:$0xff] %v1003
    // Predicated region
    $region54: #{multicnn_forward.1} parent=1 // pred_check
      _
    $region55: #{multicnn_forward.1} parent=1 // pred_check_branch
      %1008 = sbr.rel (0) target = $region57
    $region56: #{multicnn_forward.1} parent=1 // pred_region
      _
    $region57: #{multicnn_forward.1} parent=1 // pred_fallthru
      _
    // Predicated region
    $region58: #{multicnn_forward.1} parent=1 // pred_check
      _
    $region59: #{multicnn_forward.1} parent=1 // pred_check_branch
      %1010 = sbr.rel (0) target = $region61
    $region60: #{multicnn_forward.1} parent=1 // pred_region
      _
    $region61: #{multicnn_forward.1} parent=1 // pred_fallthru
      _
    %1011 = vsyncpa [#allocation3], 1
    %1012 = vsyncpa [#allocation5], 1
    %1013 = vsyncpa [#allocation8], 1

</llo_original>
